<compile_context>
chip_gen: v7x
topology: tpu7x:2x2x1
jax: 0.10.0
libtpu: 0.0.40
codegen_flags: <defaults>
</compile_context>

<pallas_src>
import jax
import jax.numpy as jnp
from jax.experimental import pallas as pl
from jax.experimental.pallas import tpu as pltpu

INPUT_DIM = 5
H1 = 64
H2 = 32
OUT_DIM = 5


def _mlp_kernel_t(x_ref, w1_ref, b1_ref, w2_ref, b2_ref, w3_ref, b3_ref, o_ref):
    # Whole hot path (3 matmuls + bias + ReLU) fused, VMEM resident.
    # Layout: features on sublanes, batch on lanes (lane-dense activations).
    x = x_ref[...]  # [INPUT_DIM, tb]

    h1 = jnp.dot(w1_ref[...], x, preferred_element_type=jnp.float32) + b1_ref[...]
    h1 = jnp.maximum(h1, 0.0)  # [H1, tb]

    # Dropout(0.3): eval-mode semantics -> identity.
    # TODO(synk): training-mode dropout would need pltpu.prng_seed/prng_random_bits.

    h2 = jnp.dot(w2_ref[...], h1, preferred_element_type=jnp.float32) + b2_ref[...]
    h2 = jnp.maximum(h2, 0.0)  # [H2, tb]

    o_ref[...] = (
        jnp.dot(w3_ref[...], h2, preferred_element_type=jnp.float32) + b3_ref[...]
    ).astype(o_ref.dtype)


def _pick_batch_tile(B: int) -> int:
    """Lane-axis (batch) tile. Small B -> one full block; large B -> 128-aligned
    tile capped at 2048, keeping >=2 grid steps so v7x megacore can shard."""
    if B <= 256:
        return B
    tb = 128
    while tb * 2 <= 2048 and tb * 2 <= (B + 1) // 2:
        tb *= 2
    return tb


def size_classifier_forward_t(x_t, params, *, tb=None):
    """Lane-dense entry point.

    x_t:    [INPUT_DIM, B] float32 (batch on lanes)
    params: (w1[64,5], b1[64,1], w2[32,64], b2[32,1], w3[5,32], b3[5,1])
    returns [OUT_DIM, B] float32 logits.
    """
    w1, b1, w2, b2, w3, b3 = params
    D, B = x_t.shape
    assert D == INPUT_DIM

    if tb is None:
        tb = _pick_batch_tile(B)

    # Pad batch (lane axis) up to a multiple of the tile; slice result back.
    Bp = -(-B // tb) * tb
    if Bp != B:
        x_t = jnp.pad(x_t, ((0, 0), (0, Bp - B)))

    grid = (Bp // tb,)

    # Weight/bias specs: full array resident in VMEM, same block every step.
    # (pipeline_mode=pl.Buffered(1) would trim a double buffer here; omitted
    #  since the weights are tiny.)
    def full_spec(shape):
        return pl.BlockSpec(shape, lambda i: (0, 0))

    out = pl.pallas_call(
        _mlp_kernel_t,
        out_shape=jax.ShapeDtypeStruct((OUT_DIM, Bp), jnp.float32),
        grid_spec=pl.GridSpec(
            grid=grid,
            in_specs=[
                pl.BlockSpec((INPUT_DIM, tb), lambda i: (0, i)),  # x tile over batch
                full_spec(w1.shape),
                full_spec(b1.shape),
                full_spec(w2.shape),
                full_spec(b2.shape),
                full_spec(w3.shape),
                full_spec(b3.shape),
            ],
            out_specs=pl.BlockSpec((OUT_DIM, tb), lambda i: (0, i)),
        ),
        compiler_params=pltpu.CompilerParams(
            dimension_semantics=("parallel",),
        ),
    )(x_t, w1, b1, w2, b2, w3, b3)

    if Bp != B:
        out = out[:, :B]
    return out


def size_classifier_forward(x, params, *, tb=None):
    """PyTorch-layout convenience wrapper: x [B, INPUT_DIM] -> [B, OUT_DIM].
    For best performance keep the transposed (batch-on-lanes) layout end-to-end
    and call size_classifier_forward_t directly (avoids wrapper transposes)."""
    return size_classifier_forward_t(x.T, params, tb=tb).T


def init_params(key):
    """Deterministic synthetic parameters. PyTorch-native [out, in] weight
    layout; biases stored as [out, 1] columns (broadcast over lanes)."""
    k1, k2, k3, k4, k5, k6 = jax.random.split(key, 6)
    w1 = jax.random.normal(k1, (H1, INPUT_DIM), jnp.float32) * 0.1
    b1 = jax.random.normal(k2, (H1, 1), jnp.float32) * 0.01
    w2 = jax.random.normal(k3, (H2, H1), jnp.float32) * 0.1
    b2 = jax.random.normal(k4, (H2, 1), jnp.float32) * 0.01
    w3 = jax.random.normal(k5, (OUT_DIM, H2), jnp.float32) * 0.1
    b3 = jax.random.normal(k6, (OUT_DIM, 1), jnp.float32) * 0.01
    return (w1, b1, w2, b2, w3, b3)


def reference_forward_t(x_t, params):
    w1, b1, w2, b2, w3, b3 = params
    h1 = jnp.maximum(w1 @ x_t + b1, 0.0)
    h2 = jnp.maximum(w2 @ h1 + b2, 0.0)
    return w3 @ h2 + b3


if __name__ == "__main__":
    key = jax.random.PRNGKey(0)
    kp, kx = jax.random.split(key)
    params = init_params(kp)

    # 1) Small batch, PyTorch-style [B, INPUT_DIM] input (single full block).
    B = 16
    x = jax.random.normal(kx, (B, INPUT_DIM), jnp.float32)
    out = jax.block_until_ready(size_classifier_forward(x, params))
    ref = reference_forward_t(x.T, params).T
    assert out.shape == (B, OUT_DIM)
    assert jnp.allclose(out, ref, atol=1e-5, rtol=1e-5), "mismatch vs. reference (B=16)"

    # 2) Lane-dense path with a non-multiple batch: pads 300 -> 384, grid of 3
    #    parallel steps (exercises tiling + tail handling; >=2 steps for v7x).
    B2 = 300
    x2_t = jax.random.normal(jax.random.PRNGKey(1), (INPUT_DIM, B2), jnp.float32)
    out2 = jax.block_until_ready(size_classifier_forward_t(x2_t, params, tb=128))
    ref2 = reference_forward_t(x2_t, params)
    assert out2.shape == (OUT_DIM, B2)
    assert jnp.allclose(out2, ref2, atol=1e-5, rtol=1e-5), "mismatch vs. reference (B=300)"

    print("KERNEL_OK")
</pallas_src>

<mosaic_0001>
module attributes {stable_mosaic.version = 11 : i64} {
  func.func @_mlp_kernel_t(%arg0: i32, %arg1: memref<5x16xf32, #tpu.memory_space<vmem>>, %arg2: memref<64x5xf32, #tpu.memory_space<vmem>>, %arg3: memref<64x1xf32, #tpu.memory_space<vmem>>, %arg4: memref<32x64xf32, #tpu.memory_space<vmem>>, %arg5: memref<32x1xf32, #tpu.memory_space<vmem>>, %arg6: memref<5x32xf32, #tpu.memory_space<vmem>>, %arg7: memref<5x1xf32, #tpu.memory_space<vmem>>, %arg8: memref<5x16xf32, #tpu.memory_space<vmem>>) attributes {dimension_semantics = [#tpu.dimension_semantics<parallel>], iteration_bounds = array<i64: 1>, scalar_prefetch = 0 : i64, scratch_operands = 0 : i64, tpu.core_type = #tpu.core_type<tc>, window_params = [{transform_indices = @transform_0, window_bounds = array<i64: 5, 16>}, {pipeline_mode = #tpu.pipeline_mode<synchronous>, transform_indices = @transform_1, window_bounds = array<i64: 64, 5>}, {pipeline_mode = #tpu.pipeline_mode<synchronous>, transform_indices = @transform_2, window_bounds = array<i64: 64, 1>}, {pipeline_mode = #tpu.pipeline_mode<synchronous>, transform_indices = @transform_3, window_bounds = array<i64: 32, 64>}, {pipeline_mode = #tpu.pipeline_mode<synchronous>, transform_indices = @transform_4, window_bounds = array<i64: 32, 1>}, {pipeline_mode = #tpu.pipeline_mode<synchronous>, transform_indices = @transform_5, window_bounds = array<i64: 5, 32>}, {pipeline_mode = #tpu.pipeline_mode<synchronous>, transform_indices = @transform_6, window_bounds = array<i64: 5, 1>}, {transform_indices = @transform_7, window_bounds = array<i64: 5, 16>}]} {
    %c0 = arith.constant 0 : index
    %c0_0 = arith.constant 0 : index
    %0 = vector.load %arg1[%c0, %c0_0] : memref<5x16xf32, #tpu.memory_space<vmem>>, vector<5x16xf32>
    %c0_1 = arith.constant 0 : index
    %c0_2 = arith.constant 0 : index
    %1 = vector.load %arg2[%c0_1, %c0_2] : memref<64x5xf32, #tpu.memory_space<vmem>>, vector<64x5xf32>
    %cst = arith.constant dense<0.000000e+00> : vector<64x16xf32>
    %2 = tpu.matmul %1, %0, %cst {dimension_numbers = #tpu.dot_dimension_numbers<[1], [0], [0], [1], [0, 0, 1, 1], [], []>} : vector<64x5xf32>, vector<5x16xf32>, vector<64x16xf32> -> vector<64x16xf32>
    %c0_3 = arith.constant 0 : index
    %c0_4 = arith.constant 0 : index
    %3 = vector.load %arg3[%c0_3, %c0_4] : memref<64x1xf32, #tpu.memory_space<vmem>>, vector<64x1xf32>
    %4 = vector.broadcast %3 : vector<64x1xf32> to vector<64x16xf32>
    %5 = arith.addf %2, %4 : vector<64x16xf32>
    %cst_5 = arith.constant 0.000000e+00 : f32
    %6 = vector.broadcast %cst_5 : f32 to vector<64x16xf32>
    %7 = arith.maximumf %5, %6 : vector<64x16xf32>
    %c0_6 = arith.constant 0 : index
    %c0_7 = arith.constant 0 : index
    %8 = vector.load %arg4[%c0_6, %c0_7] : memref<32x64xf32, #tpu.memory_space<vmem>>, vector<32x64xf32>
    %cst_8 = arith.constant dense<0.000000e+00> : vector<32x16xf32>
    %9 = tpu.matmul %8, %7, %cst_8 {dimension_numbers = #tpu.dot_dimension_numbers<[1], [0], [0], [1], [0, 0, 1, 1], [], []>} : vector<32x64xf32>, vector<64x16xf32>, vector<32x16xf32> -> vector<32x16xf32>
    %c0_9 = arith.constant 0 : index
    %c0_10 = arith.constant 0 : index
    %10 = vector.load %arg5[%c0_9, %c0_10] : memref<32x1xf32, #tpu.memory_space<vmem>>, vector<32x1xf32>
    %11 = vector.broadcast %10 : vector<32x1xf32> to vector<32x16xf32>
    %12 = arith.addf %9, %11 : vector<32x16xf32>
    %cst_11 = arith.constant 0.000000e+00 : f32
    %13 = vector.broadcast %cst_11 : f32 to vector<32x16xf32>
    %14 = arith.maximumf %12, %13 : vector<32x16xf32>
    %c0_12 = arith.constant 0 : index
    %c0_13 = arith.constant 0 : index
    %15 = vector.load %arg6[%c0_12, %c0_13] : memref<5x32xf32, #tpu.memory_space<vmem>>, vector<5x32xf32>
    %cst_14 = arith.constant dense<0.000000e+00> : vector<5x16xf32>
    %16 = tpu.matmul %15, %14, %cst_14 {dimension_numbers = #tpu.dot_dimension_numbers<[1], [0], [0], [1], [0, 0, 1, 1], [], []>} : vector<5x32xf32>, vector<32x16xf32>, vector<5x16xf32> -> vector<5x16xf32>
    %c0_15 = arith.constant 0 : index
    %c0_16 = arith.constant 0 : index
    %17 = vector.load %arg7[%c0_15, %c0_16] : memref<5x1xf32, #tpu.memory_space<vmem>>, vector<5x1xf32>
    %18 = vector.broadcast %17 : vector<5x1xf32> to vector<5x16xf32>
    %19 = arith.addf %16, %18 : vector<5x16xf32>
    %c0_17 = arith.constant 0 : index
    %c0_18 = arith.constant 0 : index
    %20 = vector.load %arg8[%c0_17, %c0_18] : memref<5x16xf32, #tpu.memory_space<vmem>>, vector<5x16xf32>
    tpu.vector_store %arg8[%c0_17, %c0_18], %19 {strides = array<i32>} : memref<5x16xf32, #tpu.memory_space<vmem>>, vector<5x16xf32>,
    return
  }
  func.func @transform_0(%arg0: i32) -> (i32, i32) {
    %c0_i32 = arith.constant 0 : i32
    %c0_i32_0 = arith.constant 0 : i32
    return %c0_i32, %arg0 : i32, i32
  }
  func.func @transform_1(%arg0: i32) -> (i32, i32) {
    %c0_i32 = arith.constant 0 : i32
    %c0_i32_0 = arith.constant 0 : i32
    %c0_i32_1 = arith.constant 0 : i32
    return %c0_i32, %c0_i32_0 : i32, i32
  }
  func.func @transform_2(%arg0: i32) -> (i32, i32) {
    %c0_i32 = arith.constant 0 : i32
    %c0_i32_0 = arith.constant 0 : i32
    %c0_i32_1 = arith.constant 0 : i32
    return %c0_i32, %c0_i32_0 : i32, i32
  }
  func.func @transform_3(%arg0: i32) -> (i32, i32) {
    %c0_i32 = arith.constant 0 : i32
    %c0_i32_0 = arith.constant 0 : i32
    %c0_i32_1 = arith.constant 0 : i32
    return %c0_i32, %c0_i32_0 : i32, i32
  }
  func.func @transform_4(%arg0: i32) -> (i32, i32) {
    %c0_i32 = arith.constant 0 : i32
    %c0_i32_0 = arith.constant 0 : i32
    %c0_i32_1 = arith.constant 0 : i32
    return %c0_i32, %c0_i32_0 : i32, i32
  }
  func.func @transform_5(%arg0: i32) -> (i32, i32) {
    %c0_i32 = arith.constant 0 : i32
    %c0_i32_0 = arith.constant 0 : i32
    %c0_i32_1 = arith.constant 0 : i32
    return %c0_i32, %c0_i32_0 : i32, i32
  }
  func.func @transform_6(%arg0: i32) -> (i32, i32) {
    %c0_i32 = arith.constant 0 : i32
    %c0_i32_0 = arith.constant 0 : i32
    %c0_i32_1 = arith.constant 0 : i32
    return %c0_i32, %c0_i32_0 : i32, i32
  }
  func.func @transform_7(%arg0: i32) -> (i32, i32) {
    %c0_i32 = arith.constant 0 : i32
    %c0_i32_0 = arith.constant 0 : i32
    return %c0_i32, %arg0 : i32, i32
  }
}

</mosaic_0001>

<llo_original>
// kernel: tpu_custom_call.1
$region0: #{tpu_custom_call.1}
  #allocation0 [shape = 'u32[]', space=smem, size = 0x4, offset = 0x4, fixed_abs, tag = 'smem constant byte address 0x4 - core index']
  #allocation1 [shape = 'u32[144,128]{1,0:T(1,128)}', space=vmem, size = 0x12000, scoped, tag = 'internal scratch']
  %s0 = inlined_call_operand.vmem [shape: f32[5,16], index: 0, kind: input, shape index: {}]
  %s1 = inlined_call_operand.vmem [shape: f32[64,5], index: 1, kind: input, shape index: {}]
  %s2 = inlined_call_operand.vmem [shape: f32[64,1], index: 2, kind: input, shape index: {}]
  %s3 = inlined_call_operand.vmem [shape: f32[32,64], index: 3, kind: input, shape index: {}]
  %s4 = inlined_call_operand.vmem [shape: f32[32,1], index: 4, kind: input, shape index: {}]
  %s5 = inlined_call_operand.vmem [shape: f32[5,32], index: 5, kind: input, shape index: {}]
  %s6 = inlined_call_operand.vmem [shape: f32[5,1], index: 6, kind: input, shape index: {}]
  %s7 = inlined_call_operand.hbm [shape: f32[5,16], index: 7, kind: output, shape index: {}]
  %s8 = sld [smem:[#allocation0]]
  $region38: #{tpu_custom_call.1} parent=0
    _
  %s10 = ssub.s32 1, %s8
  %s11 = scalar_select 0, %s10, %s8
  $region1: #{tpu_custom_call.1} parent=0
    #allocation2 [shape = 'u8[4096]{0}', space=vmem, size = 0x1000, scoped, tag = 'output window, operand 0, single buffered']
    #allocation3 [shape = 's32[1]{0}', space=sflag, size = 0x4, scoped, tag = 'scoped memory for tpu_custom_call.1']
    %12 = vsyncpa [#allocation3], 0
    // Predicated region
    $region2: #{tpu_custom_call.1} parent=1 // pred_check
      _
    $region3: #{tpu_custom_call.1} parent=1 // pred_check_branch
      %14 = sbr.rel (0) target = $region5
    $region4: #{tpu_custom_call.1} parent=1 // pred_region
      _
    $region5: #{tpu_custom_call.1} parent=1 // pred_fallthru
      _
    // Predicated region
    $region6: #{tpu_custom_call.1} parent=1 // pred_check
      _
    $region7: #{tpu_custom_call.1} parent=1 // pred_check_branch
      %16 = sbr.rel (0) target = $region9
    $region8: #{tpu_custom_call.1} parent=1 // pred_region
      _
    $region9: #{tpu_custom_call.1} parent=1 // pred_fallthru
      _
    // Predicated region
    $region10: #{tpu_custom_call.1} parent=1 // pred_check
      _
    $region11: #{tpu_custom_call.1} parent=1 // pred_check_branch
      %18 = sbr.rel (0) target = $region13
    $region12: #{tpu_custom_call.1} parent=1 // pred_region
      _
    $region13: #{tpu_custom_call.1} parent=1 // pred_fallthru
      _
    // Predicated region
    $region14: #{tpu_custom_call.1} parent=1 // pred_check
      _
    $region15: #{tpu_custom_call.1} parent=1 // pred_check_branch
      %20 = sbr.rel (0) target = $region17
    $region16: #{tpu_custom_call.1} parent=1 // pred_region
      _
    $region17: #{tpu_custom_call.1} parent=1 // pred_fallthru
      _
    // Predicated region
    $region18: #{tpu_custom_call.1} parent=1 // pred_check
      _
    $region19: #{tpu_custom_call.1} parent=1 // pred_check_branch
      %22 = sbr.rel (0) target = $region21
    $region20: #{tpu_custom_call.1} parent=1 // pred_region
      _
    $region21: #{tpu_custom_call.1} parent=1 // pred_fallthru
      _
    // Predicated region
    $region22: #{tpu_custom_call.1} parent=1 // pred_check
      _
    $region23: #{tpu_custom_call.1} parent=1 // pred_check_branch
      %24 = sbr.rel (0) target = $region25
    $region24: #{tpu_custom_call.1} parent=1 // pred_region
      _
    $region25: #{tpu_custom_call.1} parent=1 // pred_fallthru
      _
    // Predicated region
    $region26: #{tpu_custom_call.1} parent=1 // pred_check
      _
    $region27: #{tpu_custom_call.1} parent=1 // pred_check_branch
      %26 = sbr.rel (0) target = $region29
    $region28: #{tpu_custom_call.1} parent=1 // pred_region
      _
    $region29: #{tpu_custom_call.1} parent=1 // pred_fallthru
      _
    %v27 = vld [vmem:[%s0] sm:$0x1f]
    %v28 = vld [vmem:[%s1] sm:$0xff]
    %v29 = vld [vmem:[%s1 + $0x8] sm:$0xff]
    %v30 = vld [vmem:[%s1 + $0x10] sm:$0xff]
    %v31 = vld [vmem:[%s1 + $0x18] sm:$0xff]
    %v32 = vld [vmem:[%s1 + $0x20] sm:$0xff]
    %v33 = vld [vmem:[%s1 + $0x28] sm:$0xff]
    %v34 = vld [vmem:[%s1 + $0x30] sm:$0xff]
    %v35 = vld [vmem:[%s1 + $0x38] sm:$0xff]
    %v36 = vld [vmem:[%s2] sm:$0xff]
    %v37 = vld [vmem:[%s2 + $0x8] sm:$0xff]
    %v38 = vld [vmem:[%s2 + $0x10] sm:$0xff]
    %v39 = vld [vmem:[%s2 + $0x18] sm:$0xff]
    %v40 = vld [vmem:[%s2 + $0x20] sm:$0xff]
    %v41 = vld [vmem:[%s2 + $0x28] sm:$0xff]
    %v42 = vld [vmem:[%s2 + $0x30] sm:$0xff]
    %v43 = vld [vmem:[%s2 + $0x38] sm:$0xff]
    %45 = vset.pattern.permute.xlu0 0
    %46 = vperm.xlu0 %45, %v36
    %v47 = vpop.permute.xlu0 %46
    %50 = vset.pattern.permute.xlu0 0
    %51 = vperm.xlu0 %50, %v37
    %v52 = vpop.permute.xlu0 %51
    %55 = vset.pattern.permute.xlu0 0
    %56 = vperm.xlu0 %55, %v38
    %v57 = vpop.permute.xlu0 %56
    %60 = vset.pattern.permute.xlu0 0
    %61 = vperm.xlu0 %60, %v39
    %v62 = vpop.permute.xlu0 %61
    %65 = vset.pattern.permute.xlu0 0
    %66 = vperm.xlu0 %65, %v40
    %v67 = vpop.permute.xlu0 %66
    %70 = vset.pattern.permute.xlu0 0
    %71 = vperm.xlu0 %70, %v41
    %v72 = vpop.permute.xlu0 %71
    %75 = vset.pattern.permute.xlu0 0
    %76 = vperm.xlu0 %75, %v42
    %v77 = vpop.permute.xlu0 %76
    %80 = vset.pattern.permute.xlu0 0
    %81 = vperm.xlu0 %80, %v43
    %v82 = vpop.permute.xlu0 %81
    %vm84 = vcmask 39936
    %v86 = vsel %vm84, %v28, 0
    %v89 = vsel %vm84, %v29, 0
    %v92 = vsel %vm84, %v30, 0
    %v95 = vsel %vm84, %v31, 0
    %v98 = vsel %vm84, %v32, 0
    %v101 = vsel %vm84, %v33, 0
    %v104 = vsel %vm84, %v34, 0
    %v107 = vsel %vm84, %v35, 0
    %vm109 = vcmask 1044480
    %v111 = vsel %vm109, %v27, 0
    %113 = vmatprep.subr.mxu0 0.0
    %114 = vmatpush1.msra.mxu0 %v111
    %115 = vmatprep.subr.mxu0 0.0
    %116 = vmatpush1.msra.mxu0 0.0
    %117 = vmatprep.subr.mxu0 0.0
    %118 = vmatpush1.msra.mxu0 0.0
    %119 = vmatprep.subr.mxu0 0.0
    %120 = vmatpush1.msra.mxu0 0.0
    %121 = vmatprep.subr.mxu0 0.0
    %122 = vmatpush1.msra.mxu0 0.0
    %123 = vmatprep.subr.mxu0 0.0
    %124 = vmatpush1.msra.mxu0 0.0
    %125 = vmatprep.subr.mxu0 0.0
    %126 = vmatpush1.msra.mxu0 0.0
    %127 = vmatprep.subr.mxu0 0.0
    %128 = vmatpush1.msra.mxu0 0.0
    %129 = vmatprep.subr.mxu0 0.0
    %130 = vmatpush1.msra.mxu0 0.0
    %131 = vmatprep.subr.mxu0 0.0
    %132 = vmatpush1.msra.mxu0 0.0
    %133 = vmatprep.subr.mxu0 0.0
    %134 = vmatpush1.msra.mxu0 0.0
    %135 = vmatprep.subr.mxu0 0.0
    %136 = vmatpush1.msra.mxu0 0.0
    %137 = vmatprep.subr.mxu0 0.0
    %138 = vmatpush1.msra.mxu0 0.0
    %139 = vmatprep.subr.mxu0 0.0
    %140 = vmatpush1.msra.mxu0 0.0
    %141 = vmatprep.subr.mxu0 0.0
    %142 = vmatpush1.msra.mxu0 0.0
    %143 = vmatprep.subr.mxu0 0.0
    %144 = vmatpush1.msra.mxu0 0.0
    %145 = vmatprep.subr.mxu0 0.0
    %146 = vmatpush1.msra.mxu0 0.0
    %147 = vmatprep.subr.mxu0 0.0
    %148 = vmatpush1.msra.mxu0 0.0
    %149 = vmatprep.subr.mxu0 0.0
    %150 = vmatpush1.msra.mxu0 0.0
    %151 = vmatprep.subr.mxu0 0.0
    %152 = vmatpush1.msra.mxu0 0.0
    %153 = vmatprep.subr.mxu0 0.0
    %154 = vmatpush1.msra.mxu0 0.0
    %155 = vmatprep.subr.mxu0 0.0
    %156 = vmatpush1.msra.mxu0 0.0
    %157 = vmatprep.subr.mxu0 0.0
    %158 = vmatpush1.msra.mxu0 0.0
    %159 = vmatprep.subr.mxu0 0.0
    %160 = vmatpush1.msra.mxu0 0.0
    %161 = vmatprep.subr.mxu0 0.0
    %162 = vmatpush1.msra.mxu0 0.0
    %163 = vmatprep.subr.mxu0 0.0
    %164 = vmatpush1.msra.mxu0 0.0
    %165 = vmatprep.subr.mxu0 0.0
    %166 = vmatpush1.msra.mxu0 0.0
    %167 = vmatprep.subr.mxu0 0.0
    %168 = vmatpush1.msra.mxu0 0.0
    %169 = vmatprep.subr.mxu0 0.0
    %170 = vmatpush1.msra.mxu0 0.0
    %171 = vmatprep.subr.mxu0 0.0
    %172 = vmatpush1.msra.mxu0 0.0
    %173 = vmatprep.subr.mxu0 0.0
    %174 = vmatpush1.msra.mxu0 0.0
    %175 = vmatprep.subr.mxu0 0.0
    %176 = vmatpush1.msra.mxu0 0.0
    %177 = vmatprep.mubr.f32.mxu0 0.0
    %178 = vmatmul.mubr.f32.gmra.mrb[0].mxu0 %v86
    %v179 = vpop.f32.mrb[0].mxu0
    %v180 = vadd.f32 %v47, %v179
    %v181 = vpop.f32.mrb[0].mxu0
    %182 = vmatprep.mubr.f32.mxu0 0.0
    %183 = vmatmul.mubr.f32.gmra.mrb[0].mxu0 %v89
    %v184 = vpop.f32.mrb[0].mxu0
    %v185 = vadd.f32 %v52, %v184
    %v186 = vpop.f32.mrb[0].mxu0
    %187 = vmatprep.mubr.f32.mxu0 0.0
    %188 = vmatmul.mubr.f32.gmra.mrb[0].mxu0 %v92
    %v189 = vpop.f32.mrb[0].mxu0
    %v190 = vadd.f32 %v57, %v189
    %v191 = vpop.f32.mrb[0].mxu0
    %192 = vmatprep.mubr.f32.mxu0 0.0
    %193 = vmatmul.mubr.f32.gmra.mrb[0].mxu0 %v95
    %v194 = vpop.f32.mrb[0].mxu0
    %v195 = vadd.f32 %v62, %v194
    %v196 = vpop.f32.mrb[0].mxu0
    %197 = vmatprep.mubr.f32.mxu0 0.0
    %198 = vmatmul.mubr.f32.gmra.mrb[0].mxu0 %v98
    %v199 = vpop.f32.mrb[0].mxu0
    %v200 = vadd.f32 %v67, %v199
    %v201 = vpop.f32.mrb[0].mxu0
    %202 = vmatprep.mubr.f32.mxu0 0.0
    %203 = vmatmul.mubr.f32.gmra.mrb[0].mxu0 %v101
    %v204 = vpop.f32.mrb[0].mxu0
    %v205 = vadd.f32 %v72, %v204
    %v206 = vpop.f32.mrb[0].mxu0
    %207 = vmatprep.mubr.f32.mxu0 0.0
    %208 = vmatmul.mubr.f32.gmra.mrb[0].mxu0 %v104
    %v209 = vpop.f32.mrb[0].mxu0
    %v210 = vadd.f32 %v77, %v209
    %v211 = vpop.f32.mrb[0].mxu0
    %212 = vmatprep.mubr.f32.mxu0 0.0
    %213 = vmatmul.mubr.f32.gmra.mrb[0].mxu0 %v107
    %v214 = vpop.f32.mrb[0].mxu0
    %v215 = vadd.f32 %v82, %v214
    %v216 = vpop.f32.mrb[0].mxu0
    %217 = vdwg.mxu0
    %v218 = vmax.f32 %v180, 0.0
    %v219 = vmax.f32 %v185, 0.0
    %v220 = vmax.f32 %v190, 0.0
    %v221 = vmax.f32 %v195, 0.0
    %v222 = vmax.f32 %v200, 0.0
    %v223 = vmax.f32 %v205, 0.0
    %v224 = vmax.f32 %v210, 0.0
    %v225 = vmax.f32 %v215, 0.0
    %v226 = vld [vmem:[%s3] sm:$0xff]
    %v227 = vld [vmem:[%s3 + $0x8] sm:$0xff]
    %v228 = vld [vmem:[%s3 + $0x10] sm:$0xff]
    %v229 = vld [vmem:[%s3 + $0x18] sm:$0xff]
    %v230 = vld [vmem:[%s4] sm:$0xff]
    %v231 = vld [vmem:[%s4 + $0x8] sm:$0xff]
    %v232 = vld [vmem:[%s4 + $0x10] sm:$0xff]
    %v233 = vld [vmem:[%s4 + $0x18] sm:$0xff]
    %235 = vset.pattern.permute.xlu0 0
    %236 = vperm.xlu0 %235, %v230
    %v237 = vpop.permute.xlu0 %236
    %240 = vset.pattern.permute.xlu0 0
    %241 = vperm.xlu0 %240, %v231
    %v242 = vpop.permute.xlu0 %241
    %245 = vset.pattern.permute.xlu0 0
    %246 = vperm.xlu0 %245, %v232
    %v247 = vpop.permute.xlu0 %246
    %250 = vset.pattern.permute.xlu0 0
    %251 = vperm.xlu0 %250, %v233
    %v252 = vpop.permute.xlu0 %251
    %vm254 = vcmask 523264
    %v256 = vsel %vm254, %v226, 0
    %v259 = vsel %vm254, %v227, 0
    %v262 = vsel %vm254, %v228, 0
    %v265 = vsel %vm254, %v229, 0
    %267 = vmatprep.subr.mxu0 0.0
    %268 = vmatpush1.msra.mxu0 %v218
    %269 = vmatprep.subr.mxu0 0.0
    %270 = vmatpush1.msra.mxu0 %v219
    %271 = vmatprep.subr.mxu0 0.0
    %272 = vmatpush1.msra.mxu0 %v220
    %273 = vmatprep.subr.mxu0 0.0
    %274 = vmatpush1.msra.mxu0 %v221
    %275 = vmatprep.subr.mxu0 0.0
    %276 = vmatpush1.msra.mxu0 %v222
    %277 = vmatprep.subr.mxu0 0.0
    %278 = vmatpush1.msra.mxu0 %v223
    %279 = vmatprep.subr.mxu0 0.0
    %280 = vmatpush1.msra.mxu0 %v224
    %281 = vmatprep.subr.mxu0 0.0
    %282 = vmatpush1.msra.mxu0 %v225
    %283 = vmatprep.subr.mxu0 0.0
    %284 = vmatpush1.msra.mxu0 0.0
    %285 = vmatprep.subr.mxu0 0.0
    %286 = vmatpush1.msra.mxu0 0.0
    %287 = vmatprep.subr.mxu0 0.0
    %288 = vmatpush1.msra.mxu0 0.0
    %289 = vmatprep.subr.mxu0 0.0
    %290 = vmatpush1.msra.mxu0 0.0
    %291 = vmatprep.subr.mxu0 0.0
    %292 = vmatpush1.msra.mxu0 0.0
    %293 = vmatprep.subr.mxu0 0.0
    %294 = vmatpush1.msra.mxu0 0.0
    %295 = vmatprep.subr.mxu0 0.0
    %296 = vmatpush1.msra.mxu0 0.0
    %297 = vmatprep.subr.mxu0 0.0
    %298 = vmatpush1.msra.mxu0 0.0
    %299 = vmatprep.subr.mxu0 0.0
    %300 = vmatpush1.msra.mxu0 0.0
    %301 = vmatprep.subr.mxu0 0.0
    %302 = vmatpush1.msra.mxu0 0.0
    %303 = vmatprep.subr.mxu0 0.0
    %304 = vmatpush1.msra.mxu0 0.0
    %305 = vmatprep.subr.mxu0 0.0
    %306 = vmatpush1.msra.mxu0 0.0
    %307 = vmatprep.subr.mxu0 0.0
    %308 = vmatpush1.msra.mxu0 0.0
    %309 = vmatprep.subr.mxu0 0.0
    %310 = vmatpush1.msra.mxu0 0.0
    %311 = vmatprep.subr.mxu0 0.0
    %312 = vmatpush1.msra.mxu0 0.0
    %313 = vmatprep.subr.mxu0 0.0
    %314 = vmatpush1.msra.mxu0 0.0
    %315 = vmatprep.subr.mxu0 0.0
    %316 = vmatpush1.msra.mxu0 0.0
    %317 = vmatprep.subr.mxu0 0.0
    %318 = vmatpush1.msra.mxu0 0.0
    %319 = vmatprep.subr.mxu0 0.0
    %320 = vmatpush1.msra.mxu0 0.0
    %321 = vmatprep.subr.mxu0 0.0
    %322 = vmatpush1.msra.mxu0 0.0
    %323 = vmatprep.subr.mxu0 0.0
    %324 = vmatpush1.msra.mxu0 0.0
    %325 = vmatprep.subr.mxu0 0.0
    %326 = vmatpush1.msra.mxu0 0.0
    %327 = vmatprep.subr.mxu0 0.0
    %328 = vmatpush1.msra.mxu0 0.0
    %329 = vmatprep.subr.mxu0 0.0
    %330 = vmatpush1.msra.mxu0 0.0
    %331 = vmatprep.mubr.f32.mxu0 0.0
    %332 = vmatmul.mubr.f32.gmra.mrb[0].mxu0 %v256
    %v333 = vpop.f32.mrb[0].mxu0
    %v334 = vadd.f32 %v237, %v333
    %v335 = vpop.f32.mrb[0].mxu0
    %336 = vmatprep.mubr.f32.mxu0 0.0
    %337 = vmatmul.mubr.f32.gmra.mrb[0].mxu0 %v259
    %v338 = vpop.f32.mrb[0].mxu0
    %v339 = vadd.f32 %v242, %v338
    %v340 = vpop.f32.mrb[0].mxu0
    %341 = vmatprep.mubr.f32.mxu0 0.0
    %342 = vmatmul.mubr.f32.gmra.mrb[0].mxu0 %v262
    %v343 = vpop.f32.mrb[0].mxu0
    %v344 = vadd.f32 %v247, %v343
    %v345 = vpop.f32.mrb[0].mxu0
    %346 = vmatprep.mubr.f32.mxu0 0.0
    %347 = vmatmul.mubr.f32.gmra.mrb[0].mxu0 %v265
    %v348 = vpop.f32.mrb[0].mxu0
    %v349 = vadd.f32 %v252, %v348
    %v350 = vpop.f32.mrb[0].mxu0
    %351 = vdwg.mxu0
    %v352 = vmax.f32 %v334, 0.0
    %v353 = vmax.f32 %v339, 0.0
    %v354 = vmax.f32 %v344, 0.0
    %v355 = vmax.f32 %v349, 0.0
    %v356 = vld [vmem:[%s5] sm:$0x1f]
    %v357 = vld [vmem:[%s6] sm:$0x1f]
    %359 = vset.pattern.permute.xlu0 0
    %360 = vperm.xlu0 %359, %v357
    %v361 = vpop.permute.xlu0 %360
    %vm363 = vcmask 261120
    %v365 = vsel %vm363, %v356, 0
    %367 = vmatprep.subr.mxu0 0.0
    %368 = vmatpush1.msra.mxu0 %v352
    %369 = vmatprep.subr.mxu0 0.0
    %370 = vmatpush1.msra.mxu0 %v353
    %371 = vmatprep.subr.mxu0 0.0
    %372 = vmatpush1.msra.mxu0 %v354
    %373 = vmatprep.subr.mxu0 0.0
    %374 = vmatpush1.msra.mxu0 %v355
    %375 = vmatprep.subr.mxu0 0.0
    %376 = vmatpush1.msra.mxu0 0.0
    %377 = vmatprep.subr.mxu0 0.0
    %378 = vmatpush1.msra.mxu0 0.0
    %379 = vmatprep.subr.mxu0 0.0
    %380 = vmatpush1.msra.mxu0 0.0
    %381 = vmatprep.subr.mxu0 0.0
    %382 = vmatpush1.msra.mxu0 0.0
    %383 = vmatprep.subr.mxu0 0.0
    %384 = vmatpush1.msra.mxu0 0.0
    %385 = vmatprep.subr.mxu0 0.0
    %386 = vmatpush1.msra.mxu0 0.0
    %387 = vmatprep.subr.mxu0 0.0
    %388 = vmatpush1.msra.mxu0 0.0
    %389 = vmatprep.subr.mxu0 0.0
    %390 = vmatpush1.msra.mxu0 0.0
    %391 = vmatprep.subr.mxu0 0.0
    %392 = vmatpush1.msra.mxu0 0.0
    %393 = vmatprep.subr.mxu0 0.0
    %394 = vmatpush1.msra.mxu0 0.0
    %395 = vmatprep.subr.mxu0 0.0
    %396 = vmatpush1.msra.mxu0 0.0
    %397 = vmatprep.subr.mxu0 0.0
    %398 = vmatpush1.msra.mxu0 0.0
    %399 = vmatprep.subr.mxu0 0.0
    %400 = vmatpush1.msra.mxu0 0.0
    %401 = vmatprep.subr.mxu0 0.0
    %402 = vmatpush1.msra.mxu0 0.0
    %403 = vmatprep.subr.mxu0 0.0
    %404 = vmatpush1.msra.mxu0 0.0
    %405 = vmatprep.subr.mxu0 0.0
    %406 = vmatpush1.msra.mxu0 0.0
    %407 = vmatprep.subr.mxu0 0.0
    %408 = vmatpush1.msra.mxu0 0.0
    %409 = vmatprep.subr.mxu0 0.0
    %410 = vmatpush1.msra.mxu0 0.0
    %411 = vmatprep.subr.mxu0 0.0
    %412 = vmatpush1.msra.mxu0 0.0
    %413 = vmatprep.subr.mxu0 0.0
    %414 = vmatpush1.msra.mxu0 0.0
    %415 = vmatprep.subr.mxu0 0.0
    %416 = vmatpush1.msra.mxu0 0.0
    %417 = vmatprep.subr.mxu0 0.0
    %418 = vmatpush1.msra.mxu0 0.0
    %419 = vmatprep.subr.mxu0 0.0
    %420 = vmatpush1.msra.mxu0 0.0
    %421 = vmatprep.subr.mxu0 0.0
    %422 = vmatpush1.msra.mxu0 0.0
    %423 = vmatprep.subr.mxu0 0.0
    %424 = vmatpush1.msra.mxu0 0.0
    %425 = vmatprep.subr.mxu0 0.0
    %426 = vmatpush1.msra.mxu0 0.0
    %427 = vmatprep.subr.mxu0 0.0
    %428 = vmatpush1.msra.mxu0 0.0
    %429 = vmatprep.subr.mxu0 0.0
    %430 = vmatpush1.msra.mxu0 0.0
    %431 = vmatprep.mubr.f32.mxu0 0.0
    %432 = vmatmul.mubr.f32.gmra.mrb[0].mxu0 %v365
    %v433 = vpop.f32.mrb[0].mxu0
    %v434 = vadd.f32 %v361, %v433
    %v435 = vpop.f32.mrb[0].mxu0
    %436 = vdwg.mxu0
    %vm437 = vcmask 126976
    %438 = vst.msk [vmem:[#allocation2] sm:$0x1f] %vm437, %v434
    // Predicated region
    $region30: #{tpu_custom_call.1} parent=1 // pred_check
      _
    $region31: #{tpu_custom_call.1} parent=1 // pred_check_branch
      %440 = sbr.rel (0) target = $region33
    $region32: #{tpu_custom_call.1} parent=1 // pred_region
      %s442 = ssub.s32 128, 128
      %443 = vsyncadd [#allocation3], %s442
      %s445 = sshll.u32 [#allocation2], 4
      %s446 = int_to_ptr.vmem [resolvable:$true] %s445
      %448 = dma.vmem_to_hbm [thread:$0]  %s446, 128, %s7, [#allocation3]
    $region33: #{tpu_custom_call.1} parent=1 // pred_fallthru
      _
    // Predicated region
    $region34: #{tpu_custom_call.1} parent=1 // pred_check
      _
    $region35: #{tpu_custom_call.1} parent=1 // pred_check_branch
      %450 = sbr.rel (0) target = $region37
    $region36: #{tpu_custom_call.1} parent=1 // pred_region
      %451 = dma.done [#allocation3], 128
    $region37: #{tpu_custom_call.1} parent=1 // pred_fallthru
      _
    %452 = vsyncpa [#allocation3], 1

</llo_original>
